<compile_context>
chip_gen: v7x
topology: tpu7x:2x2x1
jax: 0.10.0
libtpu: 0.0.40
codegen_flags: <defaults>
</compile_context>

<pallas_src>
import functools
import math

import jax
import jax.numpy as jnp
from jax.experimental import pallas as pl
from jax.experimental.pallas import tpu as pltpu


def _round_up(n: int, m: int) -> int:
    return ((n + m - 1) // m) * m


_TM_TARGET = 1024                   # review: 512-1024 rows per M tile
_VMEM_BUDGET = 36 * 1024 * 1024     # planning budget (safe on v5e/v6e/v7x)
_VMEM_LIMIT = 56 * 1024 * 1024      # scoped VMEM limit (< 64 MiB v7x physical)


# ----------------------------- kernels -----------------------------

def _pe_kernel_single(x_ref, w_ref, pe_ref, e_ref, o_ref):
    # Single K step: whole (padded) vocab weight resident; write out directly.
    acc = jnp.dot(x_ref[...], w_ref[...], preferred_element_type=jnp.float32)
    # Expand (Sb, D) pe+bias rows to (TM, D): row i of the tile uses pe row
    # i // B, encoded as a 0/1 matrix -> one tiny MXU matmul, no relayout.
    pe_rows = jnp.dot(e_ref[...], pe_ref[...], preferred_element_type=jnp.float32)
    o_ref[...] = (acc + pe_rows).astype(o_ref.dtype)


def _pe_kernel_multi(x_ref, w_ref, pe_ref, e_ref, o_ref, acc_ref):
    # K-tiled reduction with f32 accumulator (large vocab * d_model only).
    k = pl.program_id(1)

    @pl.when(k == 0)
    def _():
        acc_ref[...] = jnp.zeros_like(acc_ref)

    acc_ref[...] += jnp.dot(x_ref[...], w_ref[...],
                            preferred_element_type=jnp.float32)

    @pl.when(k == pl.num_programs(1) - 1)
    def _():
        pe_rows = jnp.dot(e_ref[...], pe_ref[...],
                          preferred_element_type=jnp.float32)
        o_ref[...] = (acc_ref[...] + pe_rows).astype(o_ref.dtype)


# ------------------------- planning helpers -------------------------

@functools.lru_cache(maxsize=8)
def _expand_matrix(tm: int, sb: int, batch: int):
    # E[i, j] = 1 iff flattened row i (ordering s*B + b) uses pe row j.
    row_s = jnp.arange(tm, dtype=jnp.int32)[:, None] // batch
    col = jnp.arange(sb, dtype=jnp.int32)[None, :]
    return (row_s == col).astype(jnp.float32)


def _plan(S, B, V, D, mm_bytes, out_bytes):
    """Pick (Sb, S_pad, TM, TK, num_K_steps) under the VMEM budget."""
    if S * B <= _TM_TARGET:
        sb = S
    else:
        sb = min(S, max(8, (_TM_TARGET // B) // 8 * 8))

    def m_side(tm_, sb_):  # VMEM that scales with the M tile
        return (tm_ * D * 4              # f32 accumulator / result
                + 2 * tm_ * D * out_bytes    # output blocks (double-buffered)
                + 2 * sb_ * D * 4            # pe+bias rows
                + 2 * tm_ * sb_ * 4)         # expand matrix (resident)

    # Huge d_model: shrink the row tile so the D-wide blocks fit.
    while sb > 8 and m_side(sb * B, sb) > _VMEM_BUDGET // 2:
        sb = max(8, (sb // 2) // 8 * 8)

    tm = sb * B
    s_pad = S if sb == S else _round_up(S, sb)

    def fits(tk):
        return (m_side(tm, sb)
                + 2 * tm * tk * mm_bytes     # x blocks
                + 2 * tk * D * mm_bytes      # weight blocks
                ) <= _VMEM_BUDGET

    if fits(V):
        # Weight fully resident: constant block index -> DMA'd exactly once.
        return sb, s_pad, tm, V, 1
    tk = 512
    while tk > 128 and not fits(tk):
        tk //= 2
    return sb, s_pad, tm, tk, -(-V // tk)


# --------------------------- public API ---------------------------

def prepare_params(weight, bias, pe, matmul_dtype=None):
    """One-time parameter preparation (do NOT re-run per forward call).

    weight: (d_model, n_vocab) nn.Linear weight
    bias:   (d_model,)         nn.Linear bias
    pe:     (max_len, 1, d_model) positional encoding parameter
    matmul_dtype: optional (e.g. jnp.bfloat16) for the MXU operands.
    """
    d_model, n_vocab = weight.shape
    scale = math.sqrt(d_model)
    w_t = (weight.astype(jnp.float32) * scale).T          # (n_vocab, d_model)
    if matmul_dtype is not None:
        w_t = w_t.astype(matmul_dtype)
    # Fold the scaled bias into the pe table -> kernel epilogue is one add.
    pe_b = pe[:, 0, :].astype(jnp.float32) + bias.astype(jnp.float32) * scale
    return {"w_t": w_t, "pe_b": pe_b, "d_model": d_model,
            "n_vocab": n_vocab, "matmul_dtype": matmul_dtype}


def positional_encoding_forward(x, params):
    """x: (S, B, n_vocab) -> (S, B, d_model)."""
    S, B, V = x.shape
    D = params["d_model"]
    assert V == params["n_vocab"]
    mm_dtype = params["matmul_dtype"] or x.dtype
    out_dtype = x.dtype
    mm_bytes = jnp.dtype(mm_dtype).itemsize
    out_bytes = jnp.dtype(out_dtype).itemsize

    sb, s_pad, tm, tk, kt = _plan(S, B, V, D, mm_bytes, out_bytes)
    v_pad = tk * kt
    m_pad = s_pad * B

    # Per-call staging: pads are no-ops for aligned shapes (as in the demo).
    x_p = x
    if s_pad != S or v_pad != V:
        x_p = jnp.pad(x, ((0, s_pad - S), (0, 0), (0, v_pad - V)))
    x2d = x_p.reshape(m_pad, v_pad).astype(mm_dtype)       # free reshape

    w_t = params["w_t"]
    if v_pad != V:
        # NOTE: shape-static for a fixed vocab — cache the padded weight in
        # prepare_params in a real model instead of re-padding per call.
        w_t = jnp.pad(w_t, ((0, v_pad - V), (0, 0)))

    pe_b = params["pe_b"][:S]
    if s_pad != S:
        pe_b = jnp.pad(pe_b, ((0, s_pad - S), (0, 0)))

    e_mat = _expand_matrix(tm, sb, B)                      # (tm, sb), cached

    compiler_params = pltpu.CompilerParams(
        dimension_semantics=(("parallel",) if kt == 1
                             else ("parallel", "arbitrary")),
        vmem_limit_bytes=_VMEM_LIMIT,
    )

    if kt == 1:
        out2d = pl.pallas_call(
            _pe_kernel_single,
            out_shape=jax.ShapeDtypeStruct((m_pad, D), out_dtype),
            grid=(m_pad // tm,),
            in_specs=[
                pl.BlockSpec((tm, v_pad), lambda m: (m, 0)),   # x rows
                pl.BlockSpec((v_pad, D), lambda m: (0, 0)),    # weight (resident)
                pl.BlockSpec((sb, D), lambda m: (m, 0)),       # pe+bias rows
                pl.BlockSpec((tm, sb), lambda m: (0, 0)),      # expand matrix
            ],
            out_specs=pl.BlockSpec((tm, D), lambda m: (m, 0)),
            compiler_params=compiler_params,
        )(x2d, w_t, pe_b, e_mat)
    else:
        out2d = pl.pallas_call(
            _pe_kernel_multi,
            out_shape=jax.ShapeDtypeStruct((m_pad, D), out_dtype),
            grid=(m_pad // tm, kt),
            in_specs=[
                pl.BlockSpec((tm, tk), lambda m, k: (m, k)),   # x rows, K slice
                pl.BlockSpec((tk, D), lambda m, k: (k, 0)),    # weight K slice
                pl.BlockSpec((sb, D), lambda m, k: (m, 0)),    # pe+bias rows
                pl.BlockSpec((tm, sb), lambda m, k: (0, 0)),   # expand matrix
            ],
            out_specs=pl.BlockSpec((tm, D), lambda m, k: (m, 0)),
            scratch_shapes=[pltpu.VMEM((tm, D), jnp.float32)],
            compiler_params=compiler_params,
        )(x2d, w_t, pe_b, e_mat)

    return out2d[:S * B].reshape(S, B, D)


if __name__ == "__main__":
    # Small, deterministic config consistent with the module.
    d_model, n_vocab, max_len = 32, 16, 16
    S, B = 8, 2

    key = jax.random.PRNGKey(0)
    k_x, k_w, k_b, k_pe = jax.random.split(key, 4)

    weight = jax.random.normal(k_w, (d_model, n_vocab), jnp.float32) * 0.1
    bias = jax.random.normal(k_b, (d_model,), jnp.float32) * 0.1
    # kaiming_normal_ on (max_len, 1, d_model): std = sqrt(2 / d_model)
    pe = jax.random.normal(k_pe, (max_len, 1, d_model), jnp.float32) * math.sqrt(2.0 / d_model)
    x = jax.random.normal(k_x, (S, B, n_vocab), jnp.float32)

    params = prepare_params(weight, bias, pe)   # one-time prep (cacheable)
    out = positional_encoding_forward(x, params)
    out = jax.block_until_ready(out)

    # Pure-JAX reference check of the forward semantics.
    ref = (jnp.einsum("sbv,dv->sbd", x, weight) + bias) * math.sqrt(d_model) + pe[:S]
    assert out.shape == (S, B, d_model)
    assert jnp.allclose(out, ref, atol=1e-4, rtol=1e-4), \
        float(jnp.max(jnp.abs(out - ref)))

    print("KERNEL_OK")
</pallas_src>

<mosaic_0001>
module attributes {stable_mosaic.version = 11 : i64} {
  func.func @_pe_kernel_single(%arg0: i32, %arg1: memref<16x16xf32, #tpu.memory_space<vmem>>, %arg2: memref<16x32xf32, #tpu.memory_space<vmem>>, %arg3: memref<8x32xf32, #tpu.memory_space<vmem>>, %arg4: memref<16x8xf32, #tpu.memory_space<vmem>>, %arg5: memref<16x32xf32, #tpu.memory_space<vmem>>) attributes {dimension_semantics = [#tpu.dimension_semantics<parallel>], iteration_bounds = array<i64: 1>, scalar_prefetch = 0 : i64, scratch_operands = 0 : i64, tpu.core_type = #tpu.core_type<tc>, window_params = [{transform_indices = @transform_0, window_bounds = array<i64: 16, 16>}, {pipeline_mode = #tpu.pipeline_mode<synchronous>, transform_indices = @transform_1, window_bounds = array<i64: 16, 32>}, {transform_indices = @transform_2, window_bounds = array<i64: 8, 32>}, {pipeline_mode = #tpu.pipeline_mode<synchronous>, transform_indices = @transform_3, window_bounds = array<i64: 16, 8>}, {transform_indices = @transform_4, window_bounds = array<i64: 16, 32>}]} {
    %c0 = arith.constant 0 : index
    %c0_0 = arith.constant 0 : index
    %0 = vector.load %arg1[%c0, %c0_0] : memref<16x16xf32, #tpu.memory_space<vmem>>, vector<16x16xf32>
    %c0_1 = arith.constant 0 : index
    %c0_2 = arith.constant 0 : index
    %1 = vector.load %arg2[%c0_1, %c0_2] : memref<16x32xf32, #tpu.memory_space<vmem>>, vector<16x32xf32>
    %cst = arith.constant dense<0.000000e+00> : vector<16x32xf32>
    %2 = tpu.matmul %0, %1, %cst {dimension_numbers = #tpu.dot_dimension_numbers<[1], [0], [0], [1], [0, 0, 1, 1], [], []>} : vector<16x16xf32>, vector<16x32xf32>, vector<16x32xf32> -> vector<16x32xf32>
    %c0_3 = arith.constant 0 : index
    %c0_4 = arith.constant 0 : index
    %3 = vector.load %arg4[%c0_3, %c0_4] : memref<16x8xf32, #tpu.memory_space<vmem>>, vector<16x8xf32>
    %c0_5 = arith.constant 0 : index
    %c0_6 = arith.constant 0 : index
    %4 = vector.load %arg3[%c0_5, %c0_6] : memref<8x32xf32, #tpu.memory_space<vmem>>, vector<8x32xf32>
    %cst_7 = arith.constant dense<0.000000e+00> : vector<16x32xf32>
    %5 = tpu.matmul %3, %4, %cst_7 {dimension_numbers = #tpu.dot_dimension_numbers<[1], [0], [0], [1], [0, 0, 1, 1], [], []>} : vector<16x8xf32>, vector<8x32xf32>, vector<16x32xf32> -> vector<16x32xf32>
    %6 = arith.addf %2, %5 : vector<16x32xf32>
    %c0_8 = arith.constant 0 : index
    %c0_9 = arith.constant 0 : index
    %7 = vector.load %arg5[%c0_8, %c0_9] : memref<16x32xf32, #tpu.memory_space<vmem>>, vector<16x32xf32>
    tpu.vector_store %arg5[%c0_8, %c0_9], %6 {strides = array<i32>} : memref<16x32xf32, #tpu.memory_space<vmem>>, vector<16x32xf32>,
    return
  }
  func.func @transform_0(%arg0: i32) -> (i32, i32) {
    %c0_i32 = arith.constant 0 : i32
    %c0_i32_0 = arith.constant 0 : i32
    return %arg0, %c0_i32 : i32, i32
  }
  func.func @transform_1(%arg0: i32) -> (i32, i32) {
    %c0_i32 = arith.constant 0 : i32
    %c0_i32_0 = arith.constant 0 : i32
    %c0_i32_1 = arith.constant 0 : i32
    return %c0_i32, %c0_i32_0 : i32, i32
  }
  func.func @transform_2(%arg0: i32) -> (i32, i32) {
    %c0_i32 = arith.constant 0 : i32
    %c0_i32_0 = arith.constant 0 : i32
    return %arg0, %c0_i32 : i32, i32
  }
  func.func @transform_3(%arg0: i32) -> (i32, i32) {
    %c0_i32 = arith.constant 0 : i32
    %c0_i32_0 = arith.constant 0 : i32
    %c0_i32_1 = arith.constant 0 : i32
    return %c0_i32, %c0_i32_0 : i32, i32
  }
  func.func @transform_4(%arg0: i32) -> (i32, i32) {
    %c0_i32 = arith.constant 0 : i32
    %c0_i32_0 = arith.constant 0 : i32
    return %arg0, %c0_i32 : i32, i32
  }
}

</mosaic_0001>

<llo_original>
// kernel: tpu_custom_call.1
$region0: #{tpu_custom_call.1}
  #allocation0 [shape = 'u32[]', space=smem, size = 0x4, offset = 0x4, fixed_abs, tag = 'smem constant byte address 0x4 - core index']
  #allocation1 [shape = 'u32[144,128]{1,0:T(1,128)}', space=vmem, size = 0x12000, scoped, tag = 'internal scratch']
  %s0 = inlined_call_operand.vmem [shape: f32[16,16], index: 0, kind: input, shape index: {}]
  %s1 = inlined_call_operand.hbm [shape: f32[16,32], index: 1, kind: input, shape index: {}]
  %s2 = inlined_call_operand.vmem [shape: f32[8,32], index: 2, kind: input, shape index: {}]
  %s3 = inlined_call_operand.vmem [shape: f32[16,8], index: 3, kind: input, shape index: {}]
  %s4 = inlined_call_operand.hbm [shape: f32[16,32], index: 4, kind: output, shape index: {}]
  %s5 = sld [smem:[#allocation0]]
  $region30: #{tpu_custom_call.1} parent=0
    _
  %s7 = ssub.s32 1, %s5
  %s8 = scalar_select 0, %s7, %s5
  $region1: #{tpu_custom_call.1} parent=0
    #allocation2 [shape = 'u8[8192]{0}', space=vmem, size = 0x2000, scoped, tag = 'input window, operand 1, single buffered']
    #allocation3 [shape = 's32[1]{0}', space=sflag, size = 0x4, scoped, tag = 'scoped memory for tpu_custom_call.1']
    #allocation4 [shape = 's32[1]{0}', space=sflag, size = 0x4, scoped, tag = 'scoped memory for tpu_custom_call.1']
    #allocation5 [shape = 'u8[8192]{0}', space=vmem, size = 0x2000, scoped, tag = 'output window, operand 0, single buffered']
    %9 = vsyncpa [#allocation3], 0
    %10 = vsyncpa [#allocation4], 0
    // Predicated region
    $region2: #{tpu_custom_call.1} parent=1 // pred_check
      _
    $region3: #{tpu_custom_call.1} parent=1 // pred_check_branch
      %12 = sbr.rel (0) target = $region5
    $region4: #{tpu_custom_call.1} parent=1 // pred_region
      _
    $region5: #{tpu_custom_call.1} parent=1 // pred_fallthru
      _
    // Predicated region
    $region6: #{tpu_custom_call.1} parent=1 // pred_check
      _
    $region7: #{tpu_custom_call.1} parent=1 // pred_check_branch
      %14 = sbr.rel (0) target = $region9
    $region8: #{tpu_custom_call.1} parent=1 // pred_region
      %s16 = ssub.s32 256, 256
      %17 = vsyncadd [#allocation3], %s16
      %s18 = sshll.u32 [#allocation2], 4
      %s19 = int_to_ptr.vmem [resolvable:$true] %s18
      %24 = dma.hbm_to_vmem [thread:$0]  %s1, 256, %s19, [#allocation3], 128, 128, 8
    $region9: #{tpu_custom_call.1} parent=1 // pred_fallthru
      _
    // Predicated region
    $region10: #{tpu_custom_call.1} parent=1 // pred_check
      _
    $region11: #{tpu_custom_call.1} parent=1 // pred_check_branch
      %26 = sbr.rel (0) target = $region13
    $region12: #{tpu_custom_call.1} parent=1 // pred_region
      _
    $region13: #{tpu_custom_call.1} parent=1 // pred_fallthru
      _
    // Predicated region
    $region14: #{tpu_custom_call.1} parent=1 // pred_check
      _
    $region15: #{tpu_custom_call.1} parent=1 // pred_check_branch
      %28 = sbr.rel (0) target = $region17
    $region16: #{tpu_custom_call.1} parent=1 // pred_region
      _
    $region17: #{tpu_custom_call.1} parent=1 // pred_fallthru
      _
    // Predicated region
    $region18: #{tpu_custom_call.1} parent=1 // pred_check
      _
    $region19: #{tpu_custom_call.1} parent=1 // pred_check_branch
      %30 = sbr.rel (0) target = $region21
    $region20: #{tpu_custom_call.1} parent=1 // pred_region
      %31 = dma.done [#allocation3], 256
    $region21: #{tpu_custom_call.1} parent=1 // pred_fallthru
      _
    %v32 = vld [vmem:[%s0] sm:$0xff]
    %v33 = vld [vmem:[%s0 + $0x8] sm:$0xff]
    %v34 = vld [vmem:[#allocation2] sm:$0xff]
    %v35 = vld [vmem:[#allocation2 + $0x8] sm:$0xff]
    %v36 = vld [vmem:[%s3] sm:$0xff]
    %v37 = vld [vmem:[%s3 + $0x8] sm:$0xff]
    %v38 = vld [vmem:[%s2] sm:$0xff]
    %vm39 = vcmask 64512
    %v41 = vsel %vm39, %v36, 0
    %v44 = vsel %vm39, %v37, 0
    %46 = vmatprep.subr.mxu0 0.0
    %47 = vmatpush1.msra.mxu0 %v38
    %48 = vmatprep.subr.mxu0 0.0
    %49 = vmatpush1.msra.mxu0 0.0
    %50 = vmatprep.subr.mxu0 0.0
    %51 = vmatpush1.msra.mxu0 0.0
    %52 = vmatprep.subr.mxu0 0.0
    %53 = vmatpush1.msra.mxu0 0.0
    %54 = vmatprep.subr.mxu0 0.0
    %55 = vmatpush1.msra.mxu0 0.0
    %56 = vmatprep.subr.mxu0 0.0
    %57 = vmatpush1.msra.mxu0 0.0
    %58 = vmatprep.subr.mxu0 0.0
    %59 = vmatpush1.msra.mxu0 0.0
    %60 = vmatprep.subr.mxu0 0.0
    %61 = vmatpush1.msra.mxu0 0.0
    %62 = vmatprep.subr.mxu0 0.0
    %63 = vmatpush1.msra.mxu0 0.0
    %64 = vmatprep.subr.mxu0 0.0
    %65 = vmatpush1.msra.mxu0 0.0
    %66 = vmatprep.subr.mxu0 0.0
    %67 = vmatpush1.msra.mxu0 0.0
    %68 = vmatprep.subr.mxu0 0.0
    %69 = vmatpush1.msra.mxu0 0.0
    %70 = vmatprep.subr.mxu0 0.0
    %71 = vmatpush1.msra.mxu0 0.0
    %72 = vmatprep.subr.mxu0 0.0
    %73 = vmatpush1.msra.mxu0 0.0
    %74 = vmatprep.subr.mxu0 0.0
    %75 = vmatpush1.msra.mxu0 0.0
    %76 = vmatprep.subr.mxu0 0.0
    %77 = vmatpush1.msra.mxu0 0.0
    %78 = vmatprep.subr.mxu0 0.0
    %79 = vmatpush1.msra.mxu0 0.0
    %80 = vmatprep.subr.mxu0 0.0
    %81 = vmatpush1.msra.mxu0 0.0
    %82 = vmatprep.subr.mxu0 0.0
    %83 = vmatpush1.msra.mxu0 0.0
    %84 = vmatprep.subr.mxu0 0.0
    %85 = vmatpush1.msra.mxu0 0.0
    %86 = vmatprep.subr.mxu0 0.0
    %87 = vmatpush1.msra.mxu0 0.0
    %88 = vmatprep.subr.mxu0 0.0
    %89 = vmatpush1.msra.mxu0 0.0
    %90 = vmatprep.subr.mxu0 0.0
    %91 = vmatpush1.msra.mxu0 0.0
    %92 = vmatprep.subr.mxu0 0.0
    %93 = vmatpush1.msra.mxu0 0.0
    %94 = vmatprep.subr.mxu0 0.0
    %95 = vmatpush1.msra.mxu0 0.0
    %96 = vmatprep.subr.mxu0 0.0
    %97 = vmatpush1.msra.mxu0 0.0
    %98 = vmatprep.subr.mxu0 0.0
    %99 = vmatpush1.msra.mxu0 0.0
    %100 = vmatprep.subr.mxu0 0.0
    %101 = vmatpush1.msra.mxu0 0.0
    %102 = vmatprep.subr.mxu0 0.0
    %103 = vmatpush1.msra.mxu0 0.0
    %104 = vmatprep.subr.mxu0 0.0
    %105 = vmatpush1.msra.mxu0 0.0
    %106 = vmatprep.subr.mxu0 0.0
    %107 = vmatpush1.msra.mxu0 0.0
    %108 = vmatprep.subr.mxu0 0.0
    %109 = vmatpush1.msra.mxu0 0.0
    %110 = vmatprep.mubr.f32.mxu0 0.0
    %111 = vmatmul.mubr.f32.gmra.mrb[0].mxu0 %v41
    %v112 = vpop.f32.mrb[0].mxu0
    %v113 = vadd.f32 0.0, %v112
    %v114 = vpop.f32.mrb[0].mxu0
    %115 = vmatprep.mubr.f32.mxu0 0.0
    %116 = vmatmul.mubr.f32.gmra.mrb[0].mxu0 %v44
    %v117 = vpop.f32.mrb[0].mxu0
    %v118 = vadd.f32 0.0, %v117
    %v119 = vpop.f32.mrb[0].mxu0
    %120 = vdwg.mxu0
    %vm121 = vcmask 130048
    %v123 = vsel %vm121, %v32, 0
    %v126 = vsel %vm121, %v33, 0
    %128 = vmatprep.subr.mxu0 0.0
    %129 = vmatpush1.msra.mxu0 %v34
    %130 = vmatprep.subr.mxu0 0.0
    %131 = vmatpush1.msra.mxu0 %v35
    %132 = vmatprep.subr.mxu0 0.0
    %133 = vmatpush1.msra.mxu0 0.0
    %134 = vmatprep.subr.mxu0 0.0
    %135 = vmatpush1.msra.mxu0 0.0
    %136 = vmatprep.subr.mxu0 0.0
    %137 = vmatpush1.msra.mxu0 0.0
    %138 = vmatprep.subr.mxu0 0.0
    %139 = vmatpush1.msra.mxu0 0.0
    %140 = vmatprep.subr.mxu0 0.0
    %141 = vmatpush1.msra.mxu0 0.0
    %142 = vmatprep.subr.mxu0 0.0
    %143 = vmatpush1.msra.mxu0 0.0
    %144 = vmatprep.subr.mxu0 0.0
    %145 = vmatpush1.msra.mxu0 0.0
    %146 = vmatprep.subr.mxu0 0.0
    %147 = vmatpush1.msra.mxu0 0.0
    %148 = vmatprep.subr.mxu0 0.0
    %149 = vmatpush1.msra.mxu0 0.0
    %150 = vmatprep.subr.mxu0 0.0
    %151 = vmatpush1.msra.mxu0 0.0
    %152 = vmatprep.subr.mxu0 0.0
    %153 = vmatpush1.msra.mxu0 0.0
    %154 = vmatprep.subr.mxu0 0.0
    %155 = vmatpush1.msra.mxu0 0.0
    %156 = vmatprep.subr.mxu0 0.0
    %157 = vmatpush1.msra.mxu0 0.0
    %158 = vmatprep.subr.mxu0 0.0
    %159 = vmatpush1.msra.mxu0 0.0
    %160 = vmatprep.subr.mxu0 0.0
    %161 = vmatpush1.msra.mxu0 0.0
    %162 = vmatprep.subr.mxu0 0.0
    %163 = vmatpush1.msra.mxu0 0.0
    %164 = vmatprep.subr.mxu0 0.0
    %165 = vmatpush1.msra.mxu0 0.0
    %166 = vmatprep.subr.mxu0 0.0
    %167 = vmatpush1.msra.mxu0 0.0
    %168 = vmatprep.subr.mxu0 0.0
    %169 = vmatpush1.msra.mxu0 0.0
    %170 = vmatprep.subr.mxu0 0.0
    %171 = vmatpush1.msra.mxu0 0.0
    %172 = vmatprep.subr.mxu0 0.0
    %173 = vmatpush1.msra.mxu0 0.0
    %174 = vmatprep.subr.mxu0 0.0
    %175 = vmatpush1.msra.mxu0 0.0
    %176 = vmatprep.subr.mxu0 0.0
    %177 = vmatpush1.msra.mxu0 0.0
    %178 = vmatprep.subr.mxu0 0.0
    %179 = vmatpush1.msra.mxu0 0.0
    %180 = vmatprep.subr.mxu0 0.0
    %181 = vmatpush1.msra.mxu0 0.0
    %182 = vmatprep.subr.mxu0 0.0
    %183 = vmatpush1.msra.mxu0 0.0
    %184 = vmatprep.subr.mxu0 0.0
    %185 = vmatpush1.msra.mxu0 0.0
    %186 = vmatprep.subr.mxu0 0.0
    %187 = vmatpush1.msra.mxu0 0.0
    %188 = vmatprep.subr.mxu0 0.0
    %189 = vmatpush1.msra.mxu0 0.0
    %190 = vmatprep.subr.mxu0 0.0
    %191 = vmatpush1.msra.mxu0 0.0
    %192 = vmatprep.mubr.f32.mxu0 0.0
    %193 = vmatmul.mubr.f32.gmra.mrb[0].mxu0 %v123
    %v194 = vpop.f32.mrb[0].mxu0
    %v195 = vadd.f32 %v113, %v194
    %v196 = vpop.f32.mrb[0].mxu0
    %197 = vmatprep.mubr.f32.mxu0 0.0
    %198 = vmatmul.mubr.f32.gmra.mrb[0].mxu0 %v126
    %v199 = vpop.f32.mrb[0].mxu0
    %v200 = vadd.f32 %v118, %v199
    %v201 = vpop.f32.mrb[0].mxu0
    %202 = vdwg.mxu0
    %vm203 = vcmask 261120
    %204 = vst.msk [vmem:[#allocation5] sm:$0xff] %vm203, %v195
    %205 = vst.msk [vmem:[#allocation5 + $0x8] sm:$0xff] %vm203, %v200
    // Predicated region
    $region22: #{tpu_custom_call.1} parent=1 // pred_check
      _
    $region23: #{tpu_custom_call.1} parent=1 // pred_check_branch
      %207 = sbr.rel (0) target = $region25
    $region24: #{tpu_custom_call.1} parent=1 // pred_region
      %s209 = ssub.s32 256, 256
      %210 = vsyncadd [#allocation4], %s209
      %s211 = sshll.u32 [#allocation5], 4
      %s212 = int_to_ptr.vmem [resolvable:$true] %s211
      %217 = dma.vmem_to_hbm [thread:$0]  %s212, 256, %s4, [#allocation4], 128, 128, 8
    $region25: #{tpu_custom_call.1} parent=1 // pred_fallthru
      _
    // Predicated region
    $region26: #{tpu_custom_call.1} parent=1 // pred_check
      _
    $region27: #{tpu_custom_call.1} parent=1 // pred_check_branch
      %219 = sbr.rel (0) target = $region29
    $region28: #{tpu_custom_call.1} parent=1 // pred_region
      %220 = dma.done [#allocation4], 256
    $region29: #{tpu_custom_call.1} parent=1 // pred_fallthru
      _
    %221 = vsyncpa [#allocation3], 1
    %222 = vsyncpa [#allocation4], 1

</llo_original>
